<compile_context>
chip_gen: v7x
topology: tpu7x:2x2x1
jax: 0.10.0
libtpu: 0.0.40
codegen_flags: <defaults>
</compile_context>

<pallas_src>
import functools

import jax
import jax.numpy as jnp
from jax.experimental import pallas as pl
from jax.experimental.pallas import tpu as pltpu

ALPHA = 1.0   # module default
GAMMA = 2.0   # module default

_LANE = 128
_ROW_ALIGN = 16   # covers f32 (8,128) and bf16 (16,128) sublane tiling


def _focal_loss_kernel(logits_ref, targets_ref, out_ref, *,
                       alpha, gamma, total_rows, block_rows, compute_dtype):
    x = logits_ref[...]                                       # (TB, C)
    if x.dtype != compute_dtype:
        x = x.astype(compute_dtype)
    tgt = targets_ref[...]                                    # (TB, 1) int32
    tb, c = x.shape

    # Numerically stable log-softmax CE, with the one-hot gather fused into the
    # shifted-logits pass (single full-width stream; the shift cancels in ce).
    m = jnp.max(x, axis=-1, keepdims=True)                    # (TB, 1)
    shifted = x - m                                           # (TB, C), <= 0
    col = jax.lax.broadcasted_iota(jnp.int32, (tb, c), 1)     # (TB, C)
    true_shift = jnp.sum(
        jnp.where(col == tgt, shifted, jnp.zeros_like(shifted)),
        axis=-1, keepdims=True, dtype=jnp.float32)            # (TB, 1) f32
    sumexp = jnp.sum(jnp.exp(shifted), axis=-1, keepdims=True,
                     dtype=jnp.float32)                       # (TB, 1) f32

    # ce >= 0 analytically (sumexp >= exp(true_shift)); max() guards rounding so
    # (1 - pt) can never go negative.
    ce = jnp.maximum(jnp.log(sumexp) - true_shift, 0.0)       # (TB, 1) f32
    pt = jnp.exp(-ce)
    one_minus_pt = 1.0 - pt                                   # in [0, 1]

    gamma_f = float(gamma)
    if gamma_f == 0.0:
        mod = jnp.ones_like(ce)
    elif gamma_f == round(gamma_f) and 0.0 < gamma_f <= 8.0:
        # Integer gamma (incl. the default 2): unrolled multiplies, pure VALU.
        mod = one_minus_pt
        for _ in range(int(round(gamma_f)) - 1):
            mod = mod * one_minus_pt
    else:
        # Fractional gamma: explicit exp/log on the EUP, base clamped away from 0.
        mod = jnp.exp(gamma_f * jnp.log(jnp.maximum(one_minus_pt, 1e-30)))

    focal = alpha * mod * ce                                   # (TB, 1) f32

    # Mask the ragged tail block (rows past the true batch size are garbage);
    # where-select (not multiply) so inf/NaN garbage cannot leak through.
    row = (jax.lax.broadcasted_iota(jnp.int32, (tb, 1), 0)
           + pl.program_id(0) * block_rows)
    focal = jnp.where(row < total_rows, focal, 0.0)

    # Lane-dense per-block partial sum (unmasked 128-lane store, no carry).
    block_sum = jnp.sum(focal, axis=0, keepdims=True)          # (1, 1)
    out_ref[...] = jnp.broadcast_to(block_sum[:, :, None], (1, 1, _LANE))


@functools.lru_cache(maxsize=None)
def _vmem_budget_and_limit():
    """Chip-aware (tile+temporaries) byte budget and scoped VMEM limit."""
    try:
        physical = int(pltpu.get_tpu_info().vmem_capacity_bytes)
    except Exception:  # not on TPU / attribute mismatch -> conservative v7x per-TC
        physical = 64 << 20
    budget = min(24 << 20, (physical * 3) // 8)   # what _pick_block_rows sizes against
    limit = min((physical * 3) // 4, 2 * budget)  # scoped limit handed to Mosaic
    return budget, limit


def _pick_block_rows(b, c, in_itemsize, compute_itemsize, budget_bytes):
    """Largest batch tile whose *total* VMEM footprint fits `budget_bytes`.

    Counts, per batch row:
      * 2x pipelined logits input tiles            : 2 * C * in_itemsize
      * 2x pipelined (TB, 1) int32 targets tiles,
        lane-padded to (TB, 128) in VMEM           : 2 * 128 * 4
      * in-kernel full-width temporaries (shifted logits, exp(shifted),
        select output in the compute dtype; int32 column iota).
    """
    temp_bytes = 3 * c * compute_itemsize + c * 4
    per_row = 2 * c * in_itemsize + 2 * _LANE * 4 + temp_bytes
    tb = int(budget_bytes // per_row)
    tb = max(_ROW_ALIGN, (tb // _ROW_ALIGN) * _ROW_ALIGN)
    if tb >= b:
        if b >= 256:
            # Force >= 2 blocks so the "parallel" batch axis shards across both
            # TensorCores on v7x (one extra ~0.35us grid step on 1-TC chips).
            half = ((b + 1) // 2 + _ROW_ALIGN - 1) // _ROW_ALIGN * _ROW_ALIGN
            return min(half, tb)
        return b                       # single full block: divisibility waived
    return tb


def focal_loss_pallas(logits, targets, alpha=ALPHA, gamma=GAMMA,
                      block_rows=None, compute_dtype=None):
    """logits: (B, C) float32/bf16, targets: (B,) int class indices -> scalar f32."""
    b, c = logits.shape
    targets_2d = targets.astype(jnp.int32).reshape(b, 1)

    # Full-width math stays in bf16 for bf16 inputs (bf16 VPU/EUP on v6e/v7x
    # halves vreg + exp-slot traffic); pass compute_dtype=jnp.float32 to force
    # the f32 path (recommended on v5e, which has no bf16 VPU/EUP).
    if compute_dtype is None:
        compute_dtype = logits.dtype if logits.dtype == jnp.bfloat16 else jnp.float32
    compute_dtype = jnp.dtype(compute_dtype)

    budget, vmem_limit = _vmem_budget_and_limit()
    if block_rows is not None:
        tb = int(block_rows)
    else:
        tb = _pick_block_rows(b, c, jnp.dtype(logits.dtype).itemsize,
                              compute_dtype.itemsize, budget)
    nblocks = pl.cdiv(b, tb)

    kernel = functools.partial(
        _focal_loss_kernel,
        alpha=float(alpha), gamma=float(gamma),
        total_rows=b, block_rows=tb, compute_dtype=compute_dtype)

    partials = pl.pallas_call(
        kernel,
        out_shape=jax.ShapeDtypeStruct((nblocks, 1, _LANE), jnp.float32),
        grid_spec=pltpu.PrefetchScalarGridSpec(
            num_scalar_prefetch=0,
            grid=(nblocks,),
            in_specs=[
                pl.BlockSpec((tb, c), lambda i: (i, 0)),   # logits tile (full C)
                pl.BlockSpec((tb, 1), lambda i: (i, 0)),   # targets tile (lane-padded)
            ],
            out_specs=pl.BlockSpec((1, 1, _LANE), lambda i: (i, 0, 0)),
        ),
        compiler_params=pltpu.CompilerParams(
            dimension_semantics=("parallel",),             # megacore sharding on v7x
            vmem_limit_bytes=int(vmem_limit),              # matches the tile budget
        ),
    )(logits, targets_2d)

    # reduction='mean' over the true global batch size.
    return jnp.sum(partials[:, 0, 0]) / jnp.float32(b)


def focal_loss_ref(logits, targets, alpha=ALPHA, gamma=GAMMA):
    """Pure-JAX reference mirroring torch: F.cross_entropy -> focal -> mean."""
    logp = jax.nn.log_softmax(logits.astype(jnp.float32), axis=-1)
    ce = -jnp.take_along_axis(logp, targets[:, None].astype(jnp.int32), axis=-1)[:, 0]
    pt = jnp.exp(-ce)
    return jnp.mean(alpha * (1.0 - pt) ** gamma * ce)


if __name__ == "__main__":
    key = jax.random.PRNGKey(0)
    k1, k2, k3, k4, k5, k6, k7, k8 = jax.random.split(key, 8)

    # 1) Small shape consistent with [batch, num_classes] logits.
    B, C = 8, 32
    logits = jax.random.normal(k1, (B, C), dtype=jnp.float32)
    targets = jax.random.randint(k2, (B,), 0, C, dtype=jnp.int32)
    out = jax.block_until_ready(focal_loss_pallas(logits, targets))
    ref = focal_loss_ref(logits, targets)
    assert jnp.allclose(out, ref, rtol=1e-5, atol=1e-6), (out, ref)

    # 2) Multi-block + ragged-tail path (forced small tile; exercises masking).
    B2, C2 = 50, 32
    logits2 = jax.random.normal(k3, (B2, C2), dtype=jnp.float32)
    targets2 = jax.random.randint(k4, (B2,), 0, C2, dtype=jnp.int32)
    out2 = jax.block_until_ready(focal_loss_pallas(logits2, targets2, block_rows=16))
    ref2 = focal_loss_ref(logits2, targets2)
    assert jnp.allclose(out2, ref2, rtol=1e-5, atol=1e-6), (out2, ref2)

    # 3) Auto-tiled path that splits into >=2 blocks (v7x megacore sharding).
    B3, C3 = 512, 256
    logits3 = jax.random.normal(k5, (B3, C3), dtype=jnp.float32)
    targets3 = jax.random.randint(k6, (B3,), 0, C3, dtype=jnp.int32)
    out3 = jax.block_until_ready(focal_loss_pallas(logits3, targets3))
    ref3 = focal_loss_ref(logits3, targets3)
    assert jnp.allclose(out3, ref3, rtol=1e-4, atol=1e-5), (out3, ref3)

    # 4) bf16 inputs: full-width math kept in bf16, reductions in f32.
    B4, C4 = 64, 128
    logits4 = jax.random.normal(k7, (B4, C4), dtype=jnp.float32).astype(jnp.bfloat16)
    targets4 = jax.random.randint(k8, (B4,), 0, C4, dtype=jnp.int32)
    out4 = jax.block_until_ready(focal_loss_pallas(logits4, targets4))
    ref4 = focal_loss_ref(logits4.astype(jnp.float32), targets4)
    assert jnp.allclose(out4, ref4, rtol=3e-2, atol=3e-3), (out4, ref4)

    print("KERNEL_OK")
</pallas_src>

<mosaic_0001>
module attributes {stable_mosaic.version = 11 : i64} {
  func.func @_focal_loss_kernel(%arg0: i32, %arg1: memref<8x32xf32, #tpu.memory_space<vmem>>, %arg2: memref<8x1xi32, #tpu.memory_space<vmem>>, %arg3: memref<1x1x128xf32, #tpu.memory_space<vmem>>) attributes {dimension_semantics = [#tpu.dimension_semantics<parallel>], iteration_bounds = array<i64: 1>, scalar_prefetch = 0 : i64, scratch_operands = 0 : i64, tpu.core_type = #tpu.core_type<tc>, window_params = [{transform_indices = @transform_0, window_bounds = array<i64: 8, 32>}, {transform_indices = @transform_1, window_bounds = array<i64: 8, 1>}, {transform_indices = @transform_2, window_bounds = array<i64: 1, 1, 128>}]} {
    %c0 = arith.constant 0 : index
    %c0_0 = arith.constant 0 : index
    %0 = vector.load %arg1[%c0, %c0_0] : memref<8x32xf32, #tpu.memory_space<vmem>>, vector<8x32xf32>
    %c0_1 = arith.constant 0 : index
    %c0_2 = arith.constant 0 : index
    %1 = vector.load %arg2[%c0_1, %c0_2] : memref<8x1xi32, #tpu.memory_space<vmem>>, vector<8x1xi32>
    %cst = arith.constant dense<0xFF800000> : vector<8xf32>
    %2 = vector.multi_reduction <maximumf>, %0, %cst [1] : vector<8x32xf32> to vector<8xf32>
    %3 = vector.shape_cast %2 : vector<8xf32> to vector<8x1xf32>
    %4 = vector.broadcast %3 : vector<8x1xf32> to vector<8x32xf32>
    %5 = arith.subf %0, %4 : vector<8x32xf32>
    %6 = tpu.iota {dimensions = array<i32: 1>} : vector<8x32xi32>
    %7 = vector.broadcast %1 : vector<8x1xi32> to vector<8x32xi32>
    %8 = arith.cmpi eq, %6, %7 : vector<8x32xi32>
    %cst_3 = arith.constant 0.000000e+00 : f32
    %9 = vector.broadcast %cst_3 : f32 to vector<8x32xf32>
    %10 = arith.select %8, %5, %9 : vector<8x32xi1>, vector<8x32xf32>
    %cst_4 = arith.constant dense<0.000000e+00> : vector<8xf32>
    %11 = vector.multi_reduction <add>, %10, %cst_4 [1] : vector<8x32xf32> to vector<8xf32>
    %12 = vector.shape_cast %11 : vector<8xf32> to vector<8x1xf32>
    %13 = math.exp %5 : vector<8x32xf32>
    %cst_5 = arith.constant dense<0.000000e+00> : vector<8xf32>
    %14 = vector.multi_reduction <add>, %13, %cst_5 [1] : vector<8x32xf32> to vector<8xf32>
    %15 = vector.shape_cast %14 : vector<8xf32> to vector<8x1xf32>
    %16 = math.log %15 : vector<8x1xf32>
    %17 = arith.subf %16, %12 : vector<8x1xf32>
    %cst_6 = arith.constant 0.000000e+00 : f32
    %18 = vector.broadcast %cst_6 : f32 to vector<8x1xf32>
    %19 = arith.maximumf %17, %18 : vector<8x1xf32>
    %cst_7 = arith.constant 0.000000e+00 : f32
    %20 = vector.broadcast %cst_7 : f32 to vector<8x1xf32>
    %21 = arith.subf %20, %19 : vector<8x1xf32>
    %22 = math.exp %21 : vector<8x1xf32>
    %cst_8 = arith.constant 1.000000e+00 : f32
    %23 = vector.broadcast %cst_8 : f32 to vector<8x1xf32>
    %24 = arith.subf %23, %22 : vector<8x1xf32>
    %25 = arith.mulf %24, %24 : vector<8x1xf32>
    %cst_9 = arith.constant 1.000000e+00 : f32
    %26 = vector.broadcast %cst_9 : f32 to vector<8x1xf32>
    %27 = arith.mulf %26, %25 : vector<8x1xf32>
    %28 = arith.mulf %27, %19 : vector<8x1xf32>
    %29 = tpu.iota {dimensions = array<i32: 0>} : vector<8x1xi32>
    %c8_i32 = arith.constant 8 : i32
    %30 = arith.muli %arg0, %c8_i32 : i32
    %31 = vector.broadcast %30 : i32 to vector<8x1xi32>
    %32 = arith.addi %29, %31 : vector<8x1xi32>
    %c8_i32_10 = arith.constant 8 : i32
    %33 = vector.broadcast %c8_i32_10 : i32 to vector<8x1xi32>
    %34 = arith.cmpi slt, %32, %33 : vector<8x1xi32>
    %cst_11 = arith.constant 0.000000e+00 : f32
    %35 = vector.broadcast %cst_11 : f32 to vector<8x1xf32>
    %36 = arith.select %34, %28, %35 : vector<8x1xi1>, vector<8x1xf32>
    %cst_12 = arith.constant dense<0.000000e+00> : vector<1xf32>
    %37 = vector.multi_reduction <add>, %36, %cst_12 [0] : vector<8x1xf32> to vector<1xf32>
    %38 = vector.shape_cast %37 : vector<1xf32> to vector<1x1xf32>
    %39 = vector.shape_cast %38 : vector<1x1xf32> to vector<1x1x1xf32>
    %40 = vector.shape_cast %39 : vector<1x1x1xf32> to vector<1x1x1xf32>
    %41 = vector.broadcast %40 : vector<1x1x1xf32> to vector<1x1x128xf32>
    %c0_13 = arith.constant 0 : index
    %c0_14 = arith.constant 0 : index
    %c0_15 = arith.constant 0 : index
    %42 = vector.load %arg3[%c0_13, %c0_14, %c0_15] : memref<1x1x128xf32, #tpu.memory_space<vmem>>, vector<1x1x128xf32>
    tpu.vector_store %arg3[%c0_13, %c0_14, %c0_15], %41 {strides = array<i32>} : memref<1x1x128xf32, #tpu.memory_space<vmem>>, vector<1x1x128xf32>,
    return
  }
  func.func @transform_0(%arg0: i32) -> (i32, i32) {
    %c0_i32 = arith.constant 0 : i32
    %c0_i32_0 = arith.constant 0 : i32
    return %arg0, %c0_i32 : i32, i32
  }
  func.func @transform_1(%arg0: i32) -> (i32, i32) {
    %c0_i32 = arith.constant 0 : i32
    %c0_i32_0 = arith.constant 0 : i32
    return %arg0, %c0_i32 : i32, i32
  }
  func.func @transform_2(%arg0: i32) -> (i32, i32, i32) {
    %c0_i32 = arith.constant 0 : i32
    %c0_i32_0 = arith.constant 0 : i32
    %c0_i32_1 = arith.constant 0 : i32
    return %arg0, %c0_i32, %c0_i32_0 : i32, i32, i32
  }
}

</mosaic_0001>

<llo_original>
// kernel: tpu_custom_call.1
$region0: #{tpu_custom_call.1}
  #allocation0 [shape = 'u32[]', space=smem, size = 0x4, offset = 0x4, fixed_abs, tag = 'smem constant byte address 0x4 - core index']
  #allocation1 [shape = 'u32[144,128]{1,0:T(1,128)}', space=vmem, size = 0x12000, scoped, tag = 'internal scratch']
  %s0 = inlined_call_operand.vmem [shape: f32[8,32], index: 0, kind: input, shape index: {}]
  %s1 = inlined_call_operand.vmem [shape: s32[8,1], index: 1, kind: input, shape index: {}]
  %s2 = inlined_call_operand.hbm [shape: f32[1,1,128], index: 2, kind: output, shape index: {}]
  %s3 = sld [smem:[#allocation0]]
  $region18: #{tpu_custom_call.1} parent=0
    _
  %s5 = ssub.s32 1, %s3
  %s6 = scalar_select 0, %s5, %s3
  $region1: #{tpu_custom_call.1} parent=0
    #allocation2 [shape = 'u8[512]{0}', space=vmem, size = 0x400, scoped, tag = 'output window, operand 0, single buffered']
    #allocation3 [shape = 's32[1]{0}', space=sflag, size = 0x4, scoped, tag = 'scoped memory for tpu_custom_call.1']
    %7 = vsyncpa [#allocation3], 0
    // Predicated region
    $region2: #{tpu_custom_call.1} parent=1 // pred_check
      _
    $region3: #{tpu_custom_call.1} parent=1 // pred_check_branch
      %9 = sbr.rel (0) target = $region5
    $region4: #{tpu_custom_call.1} parent=1 // pred_region
      _
    $region5: #{tpu_custom_call.1} parent=1 // pred_fallthru
      _
    // Predicated region
    $region6: #{tpu_custom_call.1} parent=1 // pred_check
      _
    $region7: #{tpu_custom_call.1} parent=1 // pred_check_branch
      %11 = sbr.rel (0) target = $region9
    $region8: #{tpu_custom_call.1} parent=1 // pred_region
      _
    $region9: #{tpu_custom_call.1} parent=1 // pred_fallthru
      _
    %v12 = vld [vmem:[%s0] sm:$0xff]
    %v13 = vld [vmem:[%s1] sm:$0xff]
    %vm14 = vcmask 261120
    %v15 = vsel %vm14, %v12, -inf
    %16 = vmax.xlane.f32.xlu0 %v15
    %v17 = vpop.xlane.xlu0 %16
    %v18 = vsub.f32 %v12, %v17
    %v19 = vlaneseq
    %v20 = vand.u32 %v19, 127
    %21 = vset.pattern.permute.xlu0 0
    %22 = vperm.xlu0 %21, %v13
    %v23 = vpop.permute.xlu0 %22
    %vm24 = vcmp.eq.s32.totalorder %v20, %v23
    %v25 = vsel %vm24, %v18, 0.0
    %v26 = vsel %vm14, %v25, 0.0
    %27 = vadd.xlane.f32.xlu0 %v26
    %v28 = vpop.xlane.xlu0 %27
    %v29 = vmul.f32 %v18, 1.442695
    %v30 = vpow.pop %v29
    %v31 = vsel %vm14, %v30, 0.0
    %32 = vadd.xlane.f32.xlu0 %v31
    %v33 = vpop.xlane.xlu0 %32
    %v34 = vlog2.pop %v33
    %v35 = vmul.f32 %v34, 0.6931472
    %v36 = vsub.f32 %v35, %v28
    %v37 = vmax.f32 %v36, 0.0
    %v38 = vsub.f32 0.0, %v37
    %v39 = vmul.f32 %v38, 1.442695
    %v40 = vpow.pop %v39
    %v41 = vsub.f32 1.0, %v40
    %v42 = vmul.f32 %v41, %v41
    %v43 = vmul.f32 %v42, %v37
    %v44 = vlaneseq
    %v45 = vshrl.u32 %v44, 7
    %s46 = smul.u32 0, 8
    %v47 = vstv %s46
    %v48 = vadd.s32 %v45, %v47
    %vm49 = vcmp.lt.s32.totalorder %v48, 8
    %v50 = vsel %vm49, %v43, 0.0
    %v51 = vrot.slane %v50, 4
    %v52 = vadd.f32 %v50, %v51
    %v53 = vrot.slane %v52, 2
    %v54 = vadd.f32 %v52, %v53
    %v55 = vrot.slane %v54, 1
    %v56 = vadd.f32 %v54, %v55
    %57 = vst [vmem:[#allocation2] sm:$0x1] %v56
    // Predicated region
    $region10: #{tpu_custom_call.1} parent=1 // pred_check
      _
    $region11: #{tpu_custom_call.1} parent=1 // pred_check_branch
      %59 = sbr.rel (0) target = $region13
    $region12: #{tpu_custom_call.1} parent=1 // pred_region
      %s61 = ssub.s32 16, 16
      %62 = vsyncadd [#allocation3], %s61
      %s64 = sshll.u32 [#allocation2], 4
      %s65 = int_to_ptr.vmem [resolvable:$true] %s64
      %67 = dma.vmem_to_hbm [thread:$0]  %s65, 16, %s2, [#allocation3]
    $region13: #{tpu_custom_call.1} parent=1 // pred_fallthru
      _
    // Predicated region
    $region14: #{tpu_custom_call.1} parent=1 // pred_check
      _
    $region15: #{tpu_custom_call.1} parent=1 // pred_check_branch
      %69 = sbr.rel (0) target = $region17
    $region16: #{tpu_custom_call.1} parent=1 // pred_region
      %70 = dma.done [#allocation3], 16
    $region17: #{tpu_custom_call.1} parent=1 // pred_fallthru
      _
    %71 = vsyncpa [#allocation3], 1

</llo_original>
